<compile_context>
chip_gen: v5e
topology: v5e:2x2
jax: 0.10.0
libtpu: 0.0.40
codegen_flags: <defaults>
</compile_context>

<pallas_src>
import functools

import jax
import jax.numpy as jnp
from jax.experimental import pallas as pl
from jax.experimental.pallas import tpu as pltpu


def _round_up(a, b):
    return (a + b - 1) // b * b


def _vmem_budget_bytes():
    # ~75% of physical VMEM, capped at 100 MiB (v5e/v6e: 128 MiB -> 96 MiB,
    # v7x: 64 MiB -> 48 MiB).  Fallback is the v7x-safe 48 MiB.
    try:
        cap = int(pltpu.get_tpu_info().vmem_capacity_bytes)
    except Exception:
        cap = 64 * 1024 * 1024
    return min(cap * 3 // 4, 100 * 1024 * 1024)


def _pick_chunk(hw128, c_in, c_out, kk, hpad, budget):
    # Conservative bytes-per-lane of spatial chunk: bf16 patch scratch, 2x bf16
    # output block, 2x bf16 input window, plus f32 matmul result / renorm temps.
    coef = (_round_up(kk, 16) * 3 * 2
            + 2 * 3 * _round_up(c_out, 16) * 2
            + 2 * _round_up(3 * c_in, 16) * 2
            + _round_up(c_out, 8) * 3 * 4 * 3)
    fixed = (2 * _round_up(3 * c_in, 16) * hpad * 2
             + 2 * _round_up(c_out, 16) * _round_up(kk, 128) * 2
             + (2 << 20))
    avail = max(budget - fixed, coef * 128)
    chunk = max((avail // coef) // 128 * 128, 128)
    return int(min(chunk, hw128))


# ----------------------------------------------------------------------------
# Pallas kernel: fused im2col (static lane-shift taps into bf16 VMEM scratch)
# + one bf16 MXU matmul (f32 acc) + f32 renorm, bf16 lane-dense stores.
# ----------------------------------------------------------------------------
def _sphere_conv_kernel(win_ref, w_ref, o_ref, patch_ref, *, k, img_w, c_in, chunk):
    # win_ref:   (1, 1, 3*C_in, chunk+hpad) bf16  halo'd input window (this chunk)
    # w_ref:     (C_out, K)                 bf16  softmaxed weights, K = k*k*C_in
    # o_ref:     (1, 3, C_out, chunk)       bf16  per-component output planes
    # patch_ref: (K, 3*chunk)               bf16  fused-im2col scratch
    for c in range(3):
        rows = c * c_in
        for di in range(k):
            for dj in range(k):
                t = di * k + dj
                off = di * img_w + dj
                patch_ref[t * c_in:(t + 1) * c_in, c * chunk:(c + 1) * chunk] = (
                    win_ref[0, 0, rows:rows + c_in, off:off + chunk])

    # Single MXU matmul over all taps/channels/components (bf16 in, f32 acc).
    y = jnp.dot(w_ref[...], patch_ref[...],
                preferred_element_type=jnp.float32)          # (C_out, 3*chunk)

    # Project the weighted chordal mean back onto the sphere (rsqrt -> EUP);
    # chunk is a multiple of 128, so all slices/stores are lane-aligned.
    y0 = y[:, 0 * chunk:1 * chunk]
    y1 = y[:, 1 * chunk:2 * chunk]
    y2 = y[:, 2 * chunk:3 * chunk]
    inv = jax.lax.rsqrt(jnp.maximum(y0 * y0 + y1 * y1 + y2 * y2, 1e-24))
    o_ref[0, 0, :, :] = (y0 * inv).astype(o_ref.dtype)
    o_ref[0, 1, :, :] = (y1 * inv).astype(o_ref.dtype)
    o_ref[0, 2, :, :] = (y2 * inv).astype(o_ref.dtype)


# ----------------------------------------------------------------------------
# Parameter / weight prep (plain JAX)
# ----------------------------------------------------------------------------
def make_downsample_block_params(in_channels, out_channels, kernel_size):
    # SphereValuedConv with zero_init=True: raw weights are zeros (-> uniform softmax).
    weight = jnp.zeros(
        (out_channels, in_channels, kernel_size, kernel_size), jnp.float32)
    return {"weight": weight}


def _prepare_weight(weight):
    # (C_out, C_in, k, k) -> softmax over C_in*k*k -> (C_out, K) bf16 with
    # tap-major column order (di, dj, ci) matching the kernel's patch layout.
    c_out, c_in, k, _ = weight.shape
    w_perm = weight.transpose(0, 2, 3, 1).reshape(c_out, k * k * c_in)
    w_soft = jax.nn.softmax(w_perm.astype(jnp.float32), axis=1)
    return w_soft.astype(jnp.bfloat16)


# ----------------------------------------------------------------------------
# Forward wrapper
# ----------------------------------------------------------------------------
@functools.partial(jax.jit, static_argnames=("kernel_size",))
def downsample_block_forward(params, x, *, kernel_size):
    """x: (N, C_in, 3, H, W) unit 3-vectors -> (N, C_out, 3, Ho, Wo) float32."""
    weight = params["weight"]
    c_out, c_in, k, _ = weight.shape
    assert k == kernel_size
    n, xc, three, h, w_img = x.shape
    assert xc == c_in and three == 3
    ho, wo = h - k + 1, w_img - k + 1
    hw = h * w_img
    kk = k * k * c_in

    max_off = (k - 1) * w_img + (k - 1)
    hpad = _round_up(max_off, 128)
    hw128 = _round_up(hw, 128)

    budget = _vmem_budget_bytes()
    chunk = _pick_chunk(hw128, c_in, c_out, kk, hpad, budget)
    hw_pad = _round_up(hw, chunk)
    num_chunks = hw_pad // chunk
    wlen = chunk + hpad

    w_bf = _prepare_weight(weight)                            # (C_out, K) bf16

    # (N, C_in, 3, H, W) -> component-major rows (N, 3*C_in, hw), zero-pad the
    # tail, cast bf16 (halves HBM reads), and pre-extract the overlapping halo'd
    # windows so every in-kernel slice is static.
    xr = x.reshape(n, c_in, 3, hw).transpose(0, 2, 1, 3).reshape(n, 3 * c_in, hw)
    xp = jnp.pad(xr, ((0, 0), (0, 0), (0, hw_pad + hpad - hw))).astype(jnp.bfloat16)
    windows = jnp.stack(
        [xp[:, :, j * chunk:j * chunk + wlen] for j in range(num_chunks)], axis=1)
    # windows: (N, num_chunks, 3*C_in, wlen) bf16

    kernel = functools.partial(
        _sphere_conv_kernel, k=k, img_w=w_img, c_in=c_in, chunk=chunk)

    out_flat = pl.pallas_call(
        kernel,
        out_shape=jax.ShapeDtypeStruct((n, 3, c_out, hw_pad), jnp.bfloat16),
        grid_spec=pltpu.PrefetchScalarGridSpec(
            num_scalar_prefetch=0,
            grid=(n, num_chunks),
            in_specs=[
                pl.BlockSpec((1, 1, 3 * c_in, wlen), lambda i, j: (i, j, 0, 0)),
                pl.BlockSpec((c_out, kk), lambda i, j: (0, 0)),
            ],
            out_specs=pl.BlockSpec((1, 3, c_out, chunk), lambda i, j: (i, 0, 0, j)),
            scratch_shapes=[pltpu.VMEM((kk, 3 * chunk), jnp.bfloat16)],
        ),
        compiler_params=pltpu.CompilerParams(
            dimension_semantics=("parallel", "parallel"),
            vmem_limit_bytes=budget,
        ),
    )(windows, w_bf)

    # Crop chunk padding + the invalid (k-1) border, restore module layout, f32.
    out = out_flat[:, :, :, :hw].reshape(n, 3, c_out, h, w_img)
    out = out[:, :, :, :ho, :wo].transpose(0, 2, 1, 3, 4).astype(jnp.float32)
    return out


# ----------------------------------------------------------------------------
# Pure-JAX reference (same bf16 operand rounding as the kernel)
# ----------------------------------------------------------------------------
def _reference_forward(weight, x, kernel_size):
    c_out, c_in, k, _ = weight.shape
    n, _, _, h, w = x.shape
    ho, wo = h - k + 1, w - k + 1
    wq = _prepare_weight(weight).astype(jnp.float32).reshape(c_out, k, k, c_in)
    xq = x.astype(jnp.bfloat16).astype(jnp.float32)
    acc = jnp.zeros((n, c_out, 3, ho, wo), jnp.float32)
    for di in range(k):
        for dj in range(k):
            xs = xq[:, :, :, di:di + ho, dj:dj + wo]          # (N, C_in, 3, Ho, Wo)
            acc = acc + jnp.einsum("oc,ncpij->nopij", wq[:, di, dj, :], xs)
    nrm = jnp.linalg.norm(acc, axis=2, keepdims=True)
    return acc / jnp.maximum(nrm, 1e-12)


if __name__ == "__main__":
    key = jax.random.PRNGKey(0)
    N, C_IN, C_OUT, H, W, K = 2, 4, 8, 16, 16, 3
    kx, kw = jax.random.split(key)

    # sphere-valued input: unit 3-vectors per (n, c, h, w)
    x = jax.random.normal(kx, (N, C_IN, 3, H, W), jnp.float32)
    x = x / jnp.maximum(jnp.linalg.norm(x, axis=2, keepdims=True), 1e-12)

    # Module as specified (zero-initialized weights -> uniform averaging).
    params = make_downsample_block_params(C_IN, C_OUT, K)
    y = jax.block_until_ready(downsample_block_forward(params, x, kernel_size=K))

    assert y.shape == (N, C_OUT, 3, H - K + 1, W - K + 1), y.shape
    assert bool(jnp.all(jnp.isfinite(y)))
    norms = jnp.linalg.norm(y, axis=2)
    # bf16 output storage => up to ~0.4% relative error on the unit norm.
    assert bool(jnp.all(jnp.abs(norms - 1.0) < 1e-2))
    y_ref = _reference_forward(params["weight"], x, K)
    assert bool(jnp.allclose(y, y_ref, atol=2e-2, rtol=2e-2)), \
        float(jnp.max(jnp.abs(y - y_ref)))

    # Non-uniform weights exercise the tap/channel ordering of the fused matmul.
    params_rnd = {"weight": 0.5 * jax.random.normal(kw, (C_OUT, C_IN, K, K),
                                                    jnp.float32)}
    y2 = jax.block_until_ready(
        downsample_block_forward(params_rnd, x, kernel_size=K))
    y2_ref = _reference_forward(params_rnd["weight"], x, K)
    assert bool(jnp.allclose(y2, y2_ref, atol=2e-2, rtol=2e-2)), \
        float(jnp.max(jnp.abs(y2 - y2_ref)))

    print("KERNEL_OK")
</pallas_src>

<mosaic_0001>
module attributes {stable_mosaic.version = 11 : i64} {
  func.func @_sphere_conv_kernel(%arg0: i32, %arg1: i32, %arg2: memref<1x1x12x384xbf16, #tpu.memory_space<vmem>>, %arg3: memref<8x36xbf16, #tpu.memory_space<vmem>>, %arg4: memref<1x3x8x256xbf16, #tpu.memory_space<vmem>>, %arg5: memref<36x768xbf16, #tpu.memory_space<vmem>>) attributes {dimension_semantics = [#tpu.dimension_semantics<parallel>, #tpu.dimension_semantics<parallel>], iteration_bounds = array<i64: 2, 1>, scalar_prefetch = 0 : i64, scratch_operands = 1 : i64, tpu.core_type = #tpu.core_type<tc>, window_params = [{transform_indices = @transform_0, window_bounds = array<i64: 1, 1, 12, 384>}, {pipeline_mode = #tpu.pipeline_mode<synchronous>, transform_indices = @transform_1, window_bounds = array<i64: 8, 36>}, {transform_indices = @transform_2, window_bounds = array<i64: 1, 3, 8, 256>}]} {
    %c0 = arith.constant 0 : index
    %c0_0 = arith.constant 0 : index
    %c0_1 = arith.constant 0 : index
    %c0_2 = arith.constant 0 : index
    %0 = vector.load %arg2[%c0, %c0_0, %c0_1, %c0_2] : memref<1x1x12x384xbf16, #tpu.memory_space<vmem>>, vector<1x1x4x256xbf16>
    %1 = vector.shape_cast %0 : vector<1x1x4x256xbf16> to vector<4x256xbf16>
    %c0_3 = arith.constant 0 : index
    %c0_4 = arith.constant 0 : index
    %2 = vector.load %arg5[%c0_3, %c0_4] : memref<36x768xbf16, #tpu.memory_space<vmem>>, vector<4x256xbf16>
    tpu.vector_store %arg5[%c0_3, %c0_4], %1 {strides = array<i32>} : memref<36x768xbf16, #tpu.memory_space<vmem>>, vector<4x256xbf16>,
    %c0_5 = arith.constant 0 : index
    %c0_6 = arith.constant 0 : index
    %c0_7 = arith.constant 0 : index
    %c1 = arith.constant 1 : index
    %3 = vector.load %arg2[%c0_5, %c0_6, %c0_7, %c1] : memref<1x1x12x384xbf16, #tpu.memory_space<vmem>>, vector<1x1x4x256xbf16>
    %4 = vector.shape_cast %3 : vector<1x1x4x256xbf16> to vector<4x256xbf16>
    %c4 = arith.constant 4 : index
    %c0_8 = arith.constant 0 : index
    %5 = vector.load %arg5[%c4, %c0_8] : memref<36x768xbf16, #tpu.memory_space<vmem>>, vector<4x256xbf16>
    tpu.vector_store %arg5[%c4, %c0_8], %4 {strides = array<i32>} : memref<36x768xbf16, #tpu.memory_space<vmem>>, vector<4x256xbf16>,
    %c0_9 = arith.constant 0 : index
    %c0_10 = arith.constant 0 : index
    %c0_11 = arith.constant 0 : index
    %c2 = arith.constant 2 : index
    %6 = vector.load %arg2[%c0_9, %c0_10, %c0_11, %c2] : memref<1x1x12x384xbf16, #tpu.memory_space<vmem>>, vector<1x1x4x256xbf16>
    %7 = vector.shape_cast %6 : vector<1x1x4x256xbf16> to vector<4x256xbf16>
    %c8 = arith.constant 8 : index
    %c0_12 = arith.constant 0 : index
    %8 = vector.load %arg5[%c8, %c0_12] : memref<36x768xbf16, #tpu.memory_space<vmem>>, vector<4x256xbf16>
    tpu.vector_store %arg5[%c8, %c0_12], %7 {strides = array<i32>} : memref<36x768xbf16, #tpu.memory_space<vmem>>, vector<4x256xbf16>,
    %c0_13 = arith.constant 0 : index
    %c0_14 = arith.constant 0 : index
    %c0_15 = arith.constant 0 : index
    %c16 = arith.constant 16 : index
    %9 = vector.load %arg2[%c0_13, %c0_14, %c0_15, %c16] : memref<1x1x12x384xbf16, #tpu.memory_space<vmem>>, vector<1x1x4x256xbf16>
    %10 = vector.shape_cast %9 : vector<1x1x4x256xbf16> to vector<4x256xbf16>
    %c12 = arith.constant 12 : index
    %c0_16 = arith.constant 0 : index
    %11 = vector.load %arg5[%c12, %c0_16] : memref<36x768xbf16, #tpu.memory_space<vmem>>, vector<4x256xbf16>
    tpu.vector_store %arg5[%c12, %c0_16], %10 {strides = array<i32>} : memref<36x768xbf16, #tpu.memory_space<vmem>>, vector<4x256xbf16>,
    %c0_17 = arith.constant 0 : index
    %c0_18 = arith.constant 0 : index
    %c0_19 = arith.constant 0 : index
    %c17 = arith.constant 17 : index
    %12 = vector.load %arg2[%c0_17, %c0_18, %c0_19, %c17] : memref<1x1x12x384xbf16, #tpu.memory_space<vmem>>, vector<1x1x4x256xbf16>
    %13 = vector.shape_cast %12 : vector<1x1x4x256xbf16> to vector<4x256xbf16>
    %c16_20 = arith.constant 16 : index
    %c0_21 = arith.constant 0 : index
    %14 = vector.load %arg5[%c16_20, %c0_21] : memref<36x768xbf16, #tpu.memory_space<vmem>>, vector<4x256xbf16>
    tpu.vector_store %arg5[%c16_20, %c0_21], %13 {strides = array<i32>} : memref<36x768xbf16, #tpu.memory_space<vmem>>, vector<4x256xbf16>,
    %c0_22 = arith.constant 0 : index
    %c0_23 = arith.constant 0 : index
    %c0_24 = arith.constant 0 : index
    %c18 = arith.constant 18 : index
    %15 = vector.load %arg2[%c0_22, %c0_23, %c0_24, %c18] : memref<1x1x12x384xbf16, #tpu.memory_space<vmem>>, vector<1x1x4x256xbf16>
    %16 = vector.shape_cast %15 : vector<1x1x4x256xbf16> to vector<4x256xbf16>
    %c20 = arith.constant 20 : index
    %c0_25 = arith.constant 0 : index
    %17 = vector.load %arg5[%c20, %c0_25] : memref<36x768xbf16, #tpu.memory_space<vmem>>, vector<4x256xbf16>
    tpu.vector_store %arg5[%c20, %c0_25], %16 {strides = array<i32>} : memref<36x768xbf16, #tpu.memory_space<vmem>>, vector<4x256xbf16>,
    %c0_26 = arith.constant 0 : index
    %c0_27 = arith.constant 0 : index
    %c0_28 = arith.constant 0 : index
    %c32 = arith.constant 32 : index
    %18 = vector.load %arg2[%c0_26, %c0_27, %c0_28, %c32] : memref<1x1x12x384xbf16, #tpu.memory_space<vmem>>, vector<1x1x4x256xbf16>
    %19 = vector.shape_cast %18 : vector<1x1x4x256xbf16> to vector<4x256xbf16>
    %c24 = arith.constant 24 : index
    %c0_29 = arith.constant 0 : index
    %20 = vector.load %arg5[%c24, %c0_29] : memref<36x768xbf16, #tpu.memory_space<vmem>>, vector<4x256xbf16>
    tpu.vector_store %arg5[%c24, %c0_29], %19 {strides = array<i32>} : memref<36x768xbf16, #tpu.memory_space<vmem>>, vector<4x256xbf16>,
    %c0_30 = arith.constant 0 : index
    %c0_31 = arith.constant 0 : index
    %c0_32 = arith.constant 0 : index
    %c33 = arith.constant 33 : index
    %21 = vector.load %arg2[%c0_30, %c0_31, %c0_32, %c33] : memref<1x1x12x384xbf16, #tpu.memory_space<vmem>>, vector<1x1x4x256xbf16>
    %22 = vector.shape_cast %21 : vector<1x1x4x256xbf16> to vector<4x256xbf16>
    %c28 = arith.constant 28 : index
    %c0_33 = arith.constant 0 : index
    %23 = vector.load %arg5[%c28, %c0_33] : memref<36x768xbf16, #tpu.memory_space<vmem>>, vector<4x256xbf16>
    tpu.vector_store %arg5[%c28, %c0_33], %22 {strides = array<i32>} : memref<36x768xbf16, #tpu.memory_space<vmem>>, vector<4x256xbf16>,
    %c0_34 = arith.constant 0 : index
    %c0_35 = arith.constant 0 : index
    %c0_36 = arith.constant 0 : index
    %c34 = arith.constant 34 : index
    %24 = vector.load %arg2[%c0_34, %c0_35, %c0_36, %c34] : memref<1x1x12x384xbf16, #tpu.memory_space<vmem>>, vector<1x1x4x256xbf16>
    %25 = vector.shape_cast %24 : vector<1x1x4x256xbf16> to vector<4x256xbf16>
    %c32_37 = arith.constant 32 : index
    %c0_38 = arith.constant 0 : index
    %26 = vector.load %arg5[%c32_37, %c0_38] : memref<36x768xbf16, #tpu.memory_space<vmem>>, vector<4x256xbf16>
    tpu.vector_store %arg5[%c32_37, %c0_38], %25 {strides = array<i32>} : memref<36x768xbf16, #tpu.memory_space<vmem>>, vector<4x256xbf16>,
    %c0_39 = arith.constant 0 : index
    %c0_40 = arith.constant 0 : index
    %c4_41 = arith.constant 4 : index
    %c0_42 = arith.constant 0 : index
    %27 = vector.load %arg2[%c0_39, %c0_40, %c4_41, %c0_42] : memref<1x1x12x384xbf16, #tpu.memory_space<vmem>>, vector<1x1x4x256xbf16>
    %28 = vector.shape_cast %27 : vector<1x1x4x256xbf16> to vector<4x256xbf16>
    %c0_43 = arith.constant 0 : index
    %c256 = arith.constant 256 : index
    %29 = vector.load %arg5[%c0_43, %c256] : memref<36x768xbf16, #tpu.memory_space<vmem>>, vector<4x256xbf16>
    tpu.vector_store %arg5[%c0_43, %c256], %28 {strides = array<i32>} : memref<36x768xbf16, #tpu.memory_space<vmem>>, vector<4x256xbf16>,
    %c0_44 = arith.constant 0 : index
    %c0_45 = arith.constant 0 : index
    %c4_46 = arith.constant 4 : index
    %c1_47 = arith.constant 1 : index
    %30 = vector.load %arg2[%c0_44, %c0_45, %c4_46, %c1_47] : memref<1x1x12x384xbf16, #tpu.memory_space<vmem>>, vector<1x1x4x256xbf16>
    %31 = vector.shape_cast %30 : vector<1x1x4x256xbf16> to vector<4x256xbf16>
    %c4_48 = arith.constant 4 : index
    %c256_49 = arith.constant 256 : index
    %32 = vector.load %arg5[%c4_48, %c256_49] : memref<36x768xbf16, #tpu.memory_space<vmem>>, vector<4x256xbf16>
    tpu.vector_store %arg5[%c4_48, %c256_49], %31 {strides = array<i32>} : memref<36x768xbf16, #tpu.memory_space<vmem>>, vector<4x256xbf16>,
    %c0_50 = arith.constant 0 : index
    %c0_51 = arith.constant 0 : index
    %c4_52 = arith.constant 4 : index
    %c2_53 = arith.constant 2 : index
    %33 = vector.load %arg2[%c0_50, %c0_51, %c4_52, %c2_53] : memref<1x1x12x384xbf16, #tpu.memory_space<vmem>>, vector<1x1x4x256xbf16>
    %34 = vector.shape_cast %33 : vector<1x1x4x256xbf16> to vector<4x256xbf16>
    %c8_54 = arith.constant 8 : index
    %c256_55 = arith.constant 256 : index
    %35 = vector.load %arg5[%c8_54, %c256_55] : memref<36x768xbf16, #tpu.memory_space<vmem>>, vector<4x256xbf16>
    tpu.vector_store %arg5[%c8_54, %c256_55], %34 {strides = array<i32>} : memref<36x768xbf16, #tpu.memory_space<vmem>>, vector<4x256xbf16>,
    %c0_56 = arith.constant 0 : index
    %c0_57 = arith.constant 0 : index
    %c4_58 = arith.constant 4 : index
    %c16_59 = arith.constant 16 : index
    %36 = vector.load %arg2[%c0_56, %c0_57, %c4_58, %c16_59] : memref<1x1x12x384xbf16, #tpu.memory_space<vmem>>, vector<1x1x4x256xbf16>
    %37 = vector.shape_cast %36 : vector<1x1x4x256xbf16> to vector<4x256xbf16>
    %c12_60 = arith.constant 12 : index
    %c256_61 = arith.constant 256 : index
    %38 = vector.load %arg5[%c12_60, %c256_61] : memref<36x768xbf16, #tpu.memory_space<vmem>>, vector<4x256xbf16>
    tpu.vector_store %arg5[%c12_60, %c256_61], %37 {strides = array<i32>} : memref<36x768xbf16, #tpu.memory_space<vmem>>, vector<4x256xbf16>,
    %c0_62 = arith.constant 0 : index
    %c0_63 = arith.constant 0 : index
    %c4_64 = arith.constant 4 : index
    %c17_65 = arith.constant 17 : index
    %39 = vector.load %arg2[%c0_62, %c0_63, %c4_64, %c17_65] : memref<1x1x12x384xbf16, #tpu.memory_space<vmem>>, vector<1x1x4x256xbf16>
    %40 = vector.shape_cast %39 : vector<1x1x4x256xbf16> to vector<4x256xbf16>
    %c16_66 = arith.constant 16 : index
    %c256_67 = arith.constant 256 : index
    %41 = vector.load %arg5[%c16_66, %c256_67] : memref<36x768xbf16, #tpu.memory_space<vmem>>, vector<4x256xbf16>
    tpu.vector_store %arg5[%c16_66, %c256_67], %40 {strides = array<i32>} : memref<36x768xbf16, #tpu.memory_space<vmem>>, vector<4x256xbf16>,
    %c0_68 = arith.constant 0 : index
    %c0_69 = arith.constant 0 : index
    %c4_70 = arith.constant 4 : index
    %c18_71 = arith.constant 18 : index
    %42 = vector.load %arg2[%c0_68, %c0_69, %c4_70, %c18_71] : memref<1x1x12x384xbf16, #tpu.memory_space<vmem>>, vector<1x1x4x256xbf16>
    %43 = vector.shape_cast %42 : vector<1x1x4x256xbf16> to vector<4x256xbf16>
    %c20_72 = arith.constant 20 : index
    %c256_73 = arith.constant 256 : index
    %44 = vector.load %arg5[%c20_72, %c256_73] : memref<36x768xbf16, #tpu.memory_space<vmem>>, vector<4x256xbf16>
    tpu.vector_store %arg5[%c20_72, %c256_73], %43 {strides = array<i32>} : memref<36x768xbf16, #tpu.memory_space<vmem>>, vector<4x256xbf16>,
    %c0_74 = arith.constant 0 : index
    %c0_75 = arith.constant 0 : index
    %c4_76 = arith.constant 4 : index
    %c32_77 = arith.constant 32 : index
    %45 = vector.load %arg2[%c0_74, %c0_75, %c4_76, %c32_77] : memref<1x1x12x384xbf16, #tpu.memory_space<vmem>>, vector<1x1x4x256xbf16>
    %46 = vector.shape_cast %45 : vector<1x1x4x256xbf16> to vector<4x256xbf16>
    %c24_78 = arith.constant 24 : index
    %c256_79 = arith.constant 256 : index
    %47 = vector.load %arg5[%c24_78, %c256_79] : memref<36x768xbf16, #tpu.memory_space<vmem>>, vector<4x256xbf16>
    tpu.vector_store %arg5[%c24_78, %c256_79], %46 {strides = array<i32>} : memref<36x768xbf16, #tpu.memory_space<vmem>>, vector<4x256xbf16>,
    %c0_80 = arith.constant 0 : index
    %c0_81 = arith.constant 0 : index
    %c4_82 = arith.constant 4 : index
    %c33_83 = arith.constant 33 : index
    %48 = vector.load %arg2[%c0_80, %c0_81, %c4_82, %c33_83] : memref<1x1x12x384xbf16, #tpu.memory_space<vmem>>, vector<1x1x4x256xbf16>
    %49 = vector.shape_cast %48 : vector<1x1x4x256xbf16> to vector<4x256xbf16>
    %c28_84 = arith.constant 28 : index
    %c256_85 = arith.constant 256 : index
    %50 = vector.load %arg5[%c28_84, %c256_85] : memref<36x768xbf16, #tpu.memory_space<vmem>>, vector<4x256xbf16>
    tpu.vector_store %arg5[%c28_84, %c256_85], %49 {strides = array<i32>} : memref<36x768xbf16, #tpu.memory_space<vmem>>, vector<4x256xbf16>,
    %c0_86 = arith.constant 0 : index
    %c0_87 = arith.constant 0 : index
    %c4_88 = arith.constant 4 : index
    %c34_89 = arith.constant 34 : index
    %51 = vector.load %arg2[%c0_86, %c0_87, %c4_88, %c34_89] : memref<1x1x12x384xbf16, #tpu.memory_space<vmem>>, vector<1x1x4x256xbf16>
    %52 = vector.shape_cast %51 : vector<1x1x4x256xbf16> to vector<4x256xbf16>
    %c32_90 = arith.constant 32 : index
    %c256_91 = arith.constant 256 : index
    %53 = vector.load %arg5[%c32_90, %c256_91] : memref<36x768xbf16, #tpu.memory_space<vmem>>, vector<4x256xbf16>
    tpu.vector_store %arg5[%c32_90, %c256_91], %52 {strides = array<i32>} : memref<36x768xbf16, #tpu.memory_space<vmem>>, vector<4x256xbf16>,
    %c0_92 = arith.constant 0 : index
    %c0_93 = arith.constant 0 : index
    %c8_94 = arith.constant 8 : index
    %c0_95 = arith.constant 0 : index
    %54 = vector.load %arg2[%c0_92, %c0_93, %c8_94, %c0_95] : memref<1x1x12x384xbf16, #tpu.memory_space<vmem>>, vector<1x1x4x256xbf16>
    %55 = vector.shape_cast %54 : vector<1x1x4x256xbf16> to vector<4x256xbf16>
    %c0_96 = arith.constant 0 : index
    %c512 = arith.constant 512 : index
    %56 = vector.load %arg5[%c0_96, %c512] : memref<36x768xbf16, #tpu.memory_space<vmem>>, vector<4x256xbf16>
    tpu.vector_store %arg5[%c0_96, %c512], %55 {strides = array<i32>} : memref<36x768xbf16, #tpu.memory_space<vmem>>, vector<4x256xbf16>,
    %c0_97 = arith.constant 0 : index
    %c0_98 = arith.constant 0 : index
    %c8_99 = arith.constant 8 : index
    %c1_100 = arith.constant 1 : index
    %57 = vector.load %arg2[%c0_97, %c0_98, %c8_99, %c1_100] : memref<1x1x12x384xbf16, #tpu.memory_space<vmem>>, vector<1x1x4x256xbf16>
    %58 = vector.shape_cast %57 : vector<1x1x4x256xbf16> to vector<4x256xbf16>
    %c4_101 = arith.constant 4 : index
    %c512_102 = arith.constant 512 : index
    %59 = vector.load %arg5[%c4_101, %c512_102] : memref<36x768xbf16, #tpu.memory_space<vmem>>, vector<4x256xbf16>
    tpu.vector_store %arg5[%c4_101, %c512_102], %58 {strides = array<i32>} : memref<36x768xbf16, #tpu.memory_space<vmem>>, vector<4x256xbf16>,
    %c0_103 = arith.constant 0 : index
    %c0_104 = arith.constant 0 : index
    %c8_105 = arith.constant 8 : index
    %c2_106 = arith.constant 2 : index
    %60 = vector.load %arg2[%c0_103, %c0_104, %c8_105, %c2_106] : memref<1x1x12x384xbf16, #tpu.memory_space<vmem>>, vector<1x1x4x256xbf16>
    %61 = vector.shape_cast %60 : vector<1x1x4x256xbf16> to vector<4x256xbf16>
    %c8_107 = arith.constant 8 : index
    %c512_108 = arith.constant 512 : index
    %62 = vector.load %arg5[%c8_107, %c512_108] : memref<36x768xbf16, #tpu.memory_space<vmem>>, vector<4x256xbf16>
    tpu.vector_store %arg5[%c8_107, %c512_108], %61 {strides = array<i32>} : memref<36x768xbf16, #tpu.memory_space<vmem>>, vector<4x256xbf16>,
    %c0_109 = arith.constant 0 : index
    %c0_110 = arith.constant 0 : index
    %c8_111 = arith.constant 8 : index
    %c16_112 = arith.constant 16 : index
    %63 = vector.load %arg2[%c0_109, %c0_110, %c8_111, %c16_112] : memref<1x1x12x384xbf16, #tpu.memory_space<vmem>>, vector<1x1x4x256xbf16>
    %64 = vector.shape_cast %63 : vector<1x1x4x256xbf16> to vector<4x256xbf16>
    %c12_113 = arith.constant 12 : index
    %c512_114 = arith.constant 512 : index
    %65 = vector.load %arg5[%c12_113, %c512_114] : memref<36x768xbf16, #tpu.memory_space<vmem>>, vector<4x256xbf16>
    tpu.vector_store %arg5[%c12_113, %c512_114], %64 {strides = array<i32>} : memref<36x768xbf16, #tpu.memory_space<vmem>>, vector<4x256xbf16>,
    %c0_115 = arith.constant 0 : index
    %c0_116 = arith.constant 0 : index
    %c8_117 = arith.constant 8 : index
    %c17_118 = arith.constant 17 : index
    %66 = vector.load %arg2[%c0_115, %c0_116, %c8_117, %c17_118] : memref<1x1x12x384xbf16, #tpu.memory_space<vmem>>, vector<1x1x4x256xbf16>
    %67 = vector.shape_cast %66 : vector<1x1x4x256xbf16> to vector<4x256xbf16>
    %c16_119 = arith.constant 16 : index
    %c512_120 = arith.constant 512 : index
    %68 = vector.load %arg5[%c16_119, %c512_120] : memref<36x768xbf16, #tpu.memory_space<vmem>>, vector<4x256xbf16>
    tpu.vector_store %arg5[%c16_119, %c512_120], %67 {strides = array<i32>} : memref<36x768xbf16, #tpu.memory_space<vmem>>, vector<4x256xbf16>,
    %c0_121 = arith.constant 0 : index
    %c0_122 = arith.constant 0 : index
    %c8_123 = arith.constant 8 : index
    %c18_124 = arith.constant 18 : index
    %69 = vector.load %arg2[%c0_121, %c0_122, %c8_123, %c18_124] : memref<1x1x12x384xbf16, #tpu.memory_space<vmem>>, vector<1x1x4x256xbf16>
    %70 = vector.shape_cast %69 : vector<1x1x4x256xbf16> to vector<4x256xbf16>
    %c20_125 = arith.constant 20 : index
    %c512_126 = arith.constant 512 : index
    %71 = vector.load %arg5[%c20_125, %c512_126] : memref<36x768xbf16, #tpu.memory_space<vmem>>, vector<4x256xbf16>
    tpu.vector_store %arg5[%c20_125, %c512_126], %70 {strides = array<i32>} : memref<36x768xbf16, #tpu.memory_space<vmem>>, vector<4x256xbf16>,
    %c0_127 = arith.constant 0 : index
    %c0_128 = arith.constant 0 : index
    %c8_129 = arith.constant 8 : index
    %c32_130 = arith.constant 32 : index
    %72 = vector.load %arg2[%c0_127, %c0_128, %c8_129, %c32_130] : memref<1x1x12x384xbf16, #tpu.memory_space<vmem>>, vector<1x1x4x256xbf16>
    %73 = vector.shape_cast %72 : vector<1x1x4x256xbf16> to vector<4x256xbf16>
    %c24_131 = arith.constant 24 : index
    %c512_132 = arith.constant 512 : index
    %74 = vector.load %arg5[%c24_131, %c512_132] : memref<36x768xbf16, #tpu.memory_space<vmem>>, vector<4x256xbf16>
    tpu.vector_store %arg5[%c24_131, %c512_132], %73 {strides = array<i32>} : memref<36x768xbf16, #tpu.memory_space<vmem>>, vector<4x256xbf16>,
    %c0_133 = arith.constant 0 : index
    %c0_134 = arith.constant 0 : index
    %c8_135 = arith.constant 8 : index
    %c33_136 = arith.constant 33 : index
    %75 = vector.load %arg2[%c0_133, %c0_134, %c8_135, %c33_136] : memref<1x1x12x384xbf16, #tpu.memory_space<vmem>>, vector<1x1x4x256xbf16>
    %76 = vector.shape_cast %75 : vector<1x1x4x256xbf16> to vector<4x256xbf16>
    %c28_137 = arith.constant 28 : index
    %c512_138 = arith.constant 512 : index
    %77 = vector.load %arg5[%c28_137, %c512_138] : memref<36x768xbf16, #tpu.memory_space<vmem>>, vector<4x256xbf16>
    tpu.vector_store %arg5[%c28_137, %c512_138], %76 {strides = array<i32>} : memref<36x768xbf16, #tpu.memory_space<vmem>>, vector<4x256xbf16>,
    %c0_139 = arith.constant 0 : index
    %c0_140 = arith.constant 0 : index
    %c8_141 = arith.constant 8 : index
    %c34_142 = arith.constant 34 : index
    %78 = vector.load %arg2[%c0_139, %c0_140, %c8_141, %c34_142] : memref<1x1x12x384xbf16, #tpu.memory_space<vmem>>, vector<1x1x4x256xbf16>
    %79 = vector.shape_cast %78 : vector<1x1x4x256xbf16> to vector<4x256xbf16>
    %c32_143 = arith.constant 32 : index
    %c512_144 = arith.constant 512 : index
    %80 = vector.load %arg5[%c32_143, %c512_144] : memref<36x768xbf16, #tpu.memory_space<vmem>>, vector<4x256xbf16>
    tpu.vector_store %arg5[%c32_143, %c512_144], %79 {strides = array<i32>} : memref<36x768xbf16, #tpu.memory_space<vmem>>, vector<4x256xbf16>,
    %c0_145 = arith.constant 0 : index
    %c0_146 = arith.constant 0 : index
    %81 = vector.load %arg3[%c0_145, %c0_146] : memref<8x36xbf16, #tpu.memory_space<vmem>>, vector<8x36xbf16>
    %c0_147 = arith.constant 0 : index
    %c0_148 = arith.constant 0 : index
    %82 = vector.load %arg5[%c0_147, %c0_148] : memref<36x768xbf16, #tpu.memory_space<vmem>>, vector<36x768xbf16>
    %cst = arith.constant dense<0.000000e+00> : vector<8x768xf32>
    %83 = tpu.matmul %81, %82, %cst {dimension_numbers = #tpu.dot_dimension_numbers<[1], [0], [0], [1], [0, 0, 1, 1], [], []>} : vector<8x36xbf16>, vector<36x768xbf16>, vector<8x768xf32> -> vector<8x768xf32>
    %84 = vector.extract_strided_slice %83 {offsets = [0, 0], sizes = [8, 256], strides = [1, 1]} : vector<8x768xf32> to vector<8x256xf32>
    %85 = vector.extract_strided_slice %83 {offsets = [0, 256], sizes = [8, 256], strides = [1, 1]} : vector<8x768xf32> to vector<8x256xf32>
    %86 = vector.extract_strided_slice %83 {offsets = [0, 512], sizes = [8, 256], strides = [1, 1]} : vector<8x768xf32> to vector<8x256xf32>
    %87 = arith.mulf %84, %84 : vector<8x256xf32>
    %88 = arith.mulf %85, %85 : vector<8x256xf32>
    %89 = arith.addf %87, %88 : vector<8x256xf32>
    %90 = arith.mulf %86, %86 : vector<8x256xf32>
    %91 = arith.addf %89, %90 : vector<8x256xf32>
    %cst_149 = arith.constant 1.000000e-24 : f32
    %92 = vector.broadcast %cst_149 : f32 to vector<8x256xf32>
    %93 = arith.maximumf %91, %92 : vector<8x256xf32>
    %94 = math.rsqrt %93 : vector<8x256xf32>
    %95 = arith.mulf %84, %94 : vector<8x256xf32>
    %96 = arith.truncf %95 : vector<8x256xf32> to vector<8x256xbf16>
    %c0_150 = arith.constant 0 : index
    %c0_151 = arith.constant 0 : index
    %c0_152 = arith.constant 0 : index
    %c0_153 = arith.constant 0 : index
    %97 = vector.load %arg4[%c0_150, %c0_151, %c0_152, %c0_153] : memref<1x3x8x256xbf16, #tpu.memory_space<vmem>>, vector<1x1x8x256xbf16>
    %98 = vector.shape_cast %97 : vector<1x1x8x256xbf16> to vector<8x256xbf16>
    %99 = vector.shape_cast %96 : vector<8x256xbf16> to vector<1x1x8x256xbf16>
    tpu.vector_store %arg4[%c0_150, %c0_151, %c0_152, %c0_153], %99 {strides = array<i32>} : memref<1x3x8x256xbf16, #tpu.memory_space<vmem>>, vector<1x1x8x256xbf16>,
    %100 = arith.mulf %85, %94 : vector<8x256xf32>
    %101 = arith.truncf %100 : vector<8x256xf32> to vector<8x256xbf16>
    %c0_154 = arith.constant 0 : index
    %c1_155 = arith.constant 1 : index
    %c0_156 = arith.constant 0 : index
    %c0_157 = arith.constant 0 : index
    %102 = vector.load %arg4[%c0_154, %c1_155, %c0_156, %c0_157] : memref<1x3x8x256xbf16, #tpu.memory_space<vmem>>, vector<1x1x8x256xbf16>
    %103 = vector.shape_cast %102 : vector<1x1x8x256xbf16> to vector<8x256xbf16>
    %104 = vector.shape_cast %101 : vector<8x256xbf16> to vector<1x1x8x256xbf16>
    tpu.vector_store %arg4[%c0_154, %c1_155, %c0_156, %c0_157], %104 {strides = array<i32>} : memref<1x3x8x256xbf16, #tpu.memory_space<vmem>>, vector<1x1x8x256xbf16>,
    %105 = arith.mulf %86, %94 : vector<8x256xf32>
    %106 = arith.truncf %105 : vector<8x256xf32> to vector<8x256xbf16>
    %c0_158 = arith.constant 0 : index
    %c2_159 = arith.constant 2 : index
    %c0_160 = arith.constant 0 : index
    %c0_161 = arith.constant 0 : index
    %107 = vector.load %arg4[%c0_158, %c2_159, %c0_160, %c0_161] : memref<1x3x8x256xbf16, #tpu.memory_space<vmem>>, vector<1x1x8x256xbf16>
    %108 = vector.shape_cast %107 : vector<1x1x8x256xbf16> to vector<8x256xbf16>
    %109 = vector.shape_cast %106 : vector<8x256xbf16> to vector<1x1x8x256xbf16>
    tpu.vector_store %arg4[%c0_158, %c2_159, %c0_160, %c0_161], %109 {strides = array<i32>} : memref<1x3x8x256xbf16, #tpu.memory_space<vmem>>, vector<1x1x8x256xbf16>,
    return
  }
  func.func @transform_0(%arg0: i32, %arg1: i32) -> (i32, i32, i32, i32) {
    %c0_i32 = arith.constant 0 : i32
    %c0_i32_0 = arith.constant 0 : i32
    %c0_i32_1 = arith.constant 0 : i32
    return %arg0, %arg1, %c0_i32, %c0_i32_0 : i32, i32, i32, i32
  }
  func.func @transform_1(%arg0: i32, %arg1: i32) -> (i32, i32) {
    %c0_i32 = arith.constant 0 : i32
    %c0_i32_0 = arith.constant 0 : i32
    %c0_i32_1 = arith.constant 0 : i32
    return %c0_i32, %c0_i32_0 : i32, i32
  }
  func.func @transform_2(%arg0: i32, %arg1: i32) -> (i32, i32, i32, i32) {
    %c0_i32 = arith.constant 0 : i32
    %c0_i32_0 = arith.constant 0 : i32
    %c0_i32_1 = arith.constant 0 : i32
    return %arg0, %c0_i32, %c0_i32_0, %arg1 : i32, i32, i32, i32
  }
}

</mosaic_0001>

<llo_original>
// kernel: downsample_block_forward.1
$region0: #{downsample_block_forward.1}
  #allocation0 [shape = 'u32[]', space=smem, size = 0x4, offset = 0x4, fixed_abs, tag = 'smem constant byte address 0x4 - core index']
  #allocation1 [shape = 'u32[72,128]{1,0:T(1,128)}', space=vmem, size = 0x9000, scoped, tag = 'internal scratch']
  #allocation2 [shape = 'bf16[36,768]{1,0:T(8,128)(2,1)}', space=vmem, size = 0xf000, scoped, tag = 'scratch operand']
  %s0 = inlined_call_operand.vmem [shape: bf16[2,1,12,384], index: 0, kind: input, shape index: {}]
  %s1 = inlined_call_operand.vmem [shape: bf16[8,36], index: 1, kind: input, shape index: {}]
  %s2 = inlined_call_operand.vmem [shape: bf16[2,3,8,256], index: 2, kind: output, shape index: {}]
  %s3 = sld [smem:[#allocation0]]
  $region41: #{downsample_block_forward.1} parent=0
    _
  %s5 = ssub.s32 1, %s3
  %s6 = scalar_select 0, %s5, %s3
  loop: start=0, step=1, limit=4
  $region2: #{downsample_block_forward.1} parent=0 // loop_pre_header
    _
  $region3: #{downsample_block_forward.1} parent=0 // loop_header
    %s8 = sphi 0, %s12
    %p9 = scmp.ge.s32.totalorder %s8, 4
    %s15 = sphi 0, %s27
    %s16 = sphi 0, %s23
    %s17 = sphi 0, %s15
    %s18 = sphi 0, %s16
    %s19 = sphi 0, %s17
    %s20 = sphi 0, %s18
    %s32 = sphi 0, %s34
    %s35 = sphi 0, %s32
    %s36 = sphi 0, %s35
    %s52 = sphi 0, %s36
    %s56 = sphi 0, %s56
    %s58 = sphi 0, %s56
    %s59 = sphi 0, %s58
    %s73 = sphi 0, %s59
    %s81 = sphi 0, %s83
    %s84 = sphi 0, %s81
    %s85 = sphi 0, %s84
    %s101 = sphi 0, %s85
  $region4: #{downsample_block_forward.1} parent=0 // loop_header_branch
    %11 = sbr.rel (%p9) target = $region8
  $region5: #{downsample_block_forward.1} parent=0 // loop_body
    %s13 = ssub.s32 %s8, 1
    %s14 = ssub.s32 %s8, 2
    %s21 = sadd.s32 1, %s16
    %p22 = scmp.ge.s32.totalorder %s21, 1
    %s23 = scalar_select %p22, 0, %s21
    %s24 = sadd.s32 1, %s15
    %s25 = scalar_select %p22, %s24, %s15
    %p26 = scmp.ge.s32.totalorder %s25, 2
    %s27 = scalar_select %p26, 0, %s25
    %s28 = ssub.s32 %s15, %s27
    %s29 = ssub.s32 %s16, %s23
    %s30 = sor.u32 %s28, %s29
    %p31 = scmp.eq.s32.totalorder %s30, 0
    %s33 = sadd.s32 %s32, 1
    %s34 = scalar_select %p31, %s32, %s33
    %p37 = pneg %p31
    %p38 = scmp.eq.s32.totalorder %s8, 1
    %p39 = por %p37, %p38
    %p40 = scmp.ne.s32.totalorder %s32, %s35
    %p41 = scmp.eq.s32.totalorder %s8, 0
    %p42 = por %p40, %p41
    %p43 = scmp.ne.s32.totalorder %s32, %s35
    %p44 = scmp.eq.s32.totalorder %s13, 1
    %p45 = por %p43, %p44
    %p46 = scmp.ne.s32.totalorder %s35, %s36
    %p47 = scmp.eq.s32.totalorder %s13, 0
    %p48 = por %p46, %p47
    %p49 = scmp.ne.s32.totalorder %s35, %s36
    %p50 = scmp.eq.s32.totalorder %s14, 1
    %p51 = por %p49, %p50
    %p53 = scmp.ne.s32.totalorder %s36, %s52
    %p54 = scmp.eq.s32.totalorder %s14, 0
    %p55 = por %p53, %p54
    %s57 = sadd.s32 %s56, 1
    %p60 = scmp.eq.s32.totalorder %s8, 1
    %p61 = scmp.ne.s32.totalorder %s56, %s58
    %p62 = scmp.eq.s32.totalorder %s8, 0
    %p63 = por %p61, %p62
    %p64 = scmp.ne.s32.totalorder %s56, %s58
    %p65 = scmp.eq.s32.totalorder %s13, 1
    %p66 = por %p64, %p65
    %p67 = scmp.ne.s32.totalorder %s58, %s59
    %p68 = scmp.eq.s32.totalorder %s13, 0
    %p69 = por %p67, %p68
    %p70 = scmp.ne.s32.totalorder %s58, %s59
    %p71 = scmp.eq.s32.totalorder %s14, 1
    %p72 = por %p70, %p71
    %p74 = scmp.ne.s32.totalorder %s59, %s73
    %p75 = scmp.eq.s32.totalorder %s14, 0
    %p76 = por %p74, %p75
    %s77 = ssub.s32 %s15, %s27
    %s78 = ssub.s32 %s16, %s23
    %s79 = sor.u32 %s77, %s78
    %p80 = scmp.eq.s32.totalorder %s79, 0
    %s82 = sadd.s32 %s81, 1
    %s83 = scalar_select %p80, %s81, %s82
    %p86 = pneg %p80
    %p87 = scmp.eq.s32.totalorder %s8, 1
    %p88 = por %p86, %p87
    %p89 = scmp.ne.s32.totalorder %s81, %s84
    %p90 = scmp.eq.s32.totalorder %s8, 0
    %p91 = por %p89, %p90
    %p92 = scmp.ne.s32.totalorder %s81, %s84
    %p93 = scmp.eq.s32.totalorder %s13, 1
    %p94 = por %p92, %p93
    %p95 = scmp.ne.s32.totalorder %s84, %s85
    %p96 = scmp.eq.s32.totalorder %s13, 0
    %p97 = por %p95, %p96
    %p98 = scmp.ne.s32.totalorder %s84, %s85
    %p99 = scmp.eq.s32.totalorder %s14, 1
    %p100 = por %p98, %p99
    %p102 = scmp.ne.s32.totalorder %s85, %s101
    %p103 = scmp.eq.s32.totalorder %s14, 0
    %p104 = por %p102, %p103
    %p105 = scmp.le.s32.totalorder 1, %s8
    %p106 = scmp.lt.s32.totalorder %s8, 3
    %p107 = pnand %p105, %p106
    %p108 = pneg %p107
    // Predicated region
    $region9: #{downsample_block_forward.1} parent=5 // pred_check
      _
    $region10: #{downsample_block_forward.1} parent=5 // pred_check_branch
      %110 = sbr.rel (%p107) target = $region12
    $region11: #{downsample_block_forward.1} parent=5 // pred_region
      %s111 = ssub.s32 %s8, 1
      // Predicated region
      $region13: #{downsample_block_forward.1} parent=11 // pred_check
        %p112 = pneg %p69
      $region14: #{downsample_block_forward.1} parent=11 // pred_check_branch
        %114 = sbr.rel (%p112) target = $region16
      $region15: #{downsample_block_forward.1} parent=11 // pred_region
        _
      $region16: #{downsample_block_forward.1} parent=11 // pred_fallthru
        _
    $region12: #{downsample_block_forward.1} parent=5 // pred_fallthru
      _
    %p115 = scmp.lt.s32.totalorder %s8, 2
    // Predicated region
    $region17: #{downsample_block_forward.1} parent=5 // pred_check
      %p116 = pneg %p115
    $region18: #{downsample_block_forward.1} parent=5 // pred_check_branch
      %118 = sbr.rel (%p116) target = $region20
    $region19: #{downsample_block_forward.1} parent=5 // pred_region
      // Predicated region
      $region21: #{downsample_block_forward.1} parent=19 // pred_check
        %p119 = pneg %p42
      $region22: #{downsample_block_forward.1} parent=19 // pred_check_branch
        %121 = sbr.rel (%p119) target = $region24
      $region23: #{downsample_block_forward.1} parent=19 // pred_region
        %p122 = scmp.lt.s32.totalorder %s15, 1
        %s123 = scalar_select %p122, %s15, 1
        %p124 = scmp.lt.s32.totalorder %s16, 0
        %s125 = scalar_select %p124, %s16, 0
        %s126 = smul.addr %s125, 6
        %s127 = smul.addr %s123, 6
        %s128 = sadd.s32 %s126, %s127
        %s129 = smul.addr %s128, 4
        %s130 = scalar_lea.vmem %s0, %s129
      $region24: #{downsample_block_forward.1} parent=19 // pred_fallthru
        _
    $region20: #{downsample_block_forward.1} parent=5 // pred_fallthru
      _
    %p131 = scmp.le.s32.totalorder 1, %s8
    %p132 = scmp.lt.s32.totalorder %s8, 3
    %p133 = pnand %p131, %p132
    %p134 = pneg %p133
    // Predicated region
    $region25: #{downsample_block_forward.1} parent=5 // pred_check
      _
    $region26: #{downsample_block_forward.1} parent=5 // pred_check_branch
      %136 = sbr.rel (%p133) target = $region28
    $region27: #{downsample_block_forward.1} parent=5 // pred_region
      %s137 = ssub.s32 %s8, 1
      %p138 = scmp.lt.s32.totalorder %s17, 1
      %s139 = scalar_select %p138, %s17, 1
      %p140 = scmp.lt.s32.totalorder %s18, 0
      %s141 = scalar_select %p140, %s18, 0
      %s142 = smul.addr %s141, 6
      %s143 = smul.addr %s139, 6
      %s144 = sadd.s32 %s142, %s143
      %s145 = smul.addr %s144, 4
      %s146 = scalar_lea.vmem %s0, %s145
      %p147 = pneg %p48
      %p148 = pneg %p45
      %p149 = pneg %p69
      %p150 = pneg %p66
      %p151 = pneg %p97
      %p152 = pneg %p94
      %s153 = smul.u32 2, %s18
      %p154 = scmp.lt.s32.totalorder %s17, 1
      %s155 = scalar_select %p154, %s17, 1
      %p156 = scmp.lt.s32.totalorder %s153, 1
      %s157 = scalar_select %p156, %s153, 1
      %s158 = smul.addr %s155, 6
      %s159 = sadd.s32 %s157, %s158
      %s160 = smul.addr %s159, 4
      %s161 = scalar_lea.vmem %s2, %s160
      %p162 = scmp.lt.s32.totalorder %s17, 1
      %s163 = scalar_select %p162, %s17, 1
      %p164 = scmp.lt.s32.totalorder %s18, 0
      %s165 = scalar_select %p164, %s18, 0
      %s166 = smul.addr %s165, 6
      %s167 = smul.addr %s163, 6
      %s168 = sadd.s32 %s166, %s167
      %s169 = smul.addr %s168, 4
      %s170 = scalar_lea.vmem %s0, %s169
      %s171 = smul.u32 2, %s18
      %p172 = scmp.lt.s32.totalorder %s17, 1
      %s173 = scalar_select %p172, %s17, 1
      %p174 = scmp.lt.s32.totalorder %s171, 1
      %s175 = scalar_select %p174, %s171, 1
      %s176 = smul.addr %s173, 6
      %s177 = sadd.s32 %s175, %s176
      %s178 = smul.addr %s177, 4
      %s179 = scalar_lea.vmem %s2, %s178
      %s180 = smul.u32 2, %s18
      %v182 = vld [vmem:[%s170] sm:$0x33]
      %183 = vst [vmem:[#allocation2] sm:$0x33] %v182
      %v184 = vld [vmem:[%s170] sm:$0x33]
      %v185 = vld [vmem:[%s170 + $0x8] sm:$0x3]
      %v188 = vrot.slane %v184, 6
      %v189 = vrot.slane %v185, 6
      %190 = vrot.lane.b32.xlu0 %v188, 127
      %v191 = vpop.permute.xlu0 %190
      %192 = vrot.lane.b32.xlu0 %v189, 127
      %v193 = vpop.permute.xlu0 %192
      %v194 = vrot.slane %v191, 4
      %v195 = vrot.slane %v193, 4
      %vm196 = vcmask 1043456
      %v197 = vsel %vm196, %v194, %v195
      %vm198 = vcmask 1039360
      %v199 = vsel %vm198, %v191, %v197
      %201 = vst [vmem:[#allocation2] sm:$0xcc] %v199
      %v202 = vld [vmem:[%s170] sm:$0x33]
      %v203 = vld [vmem:[%s170 + $0x8] sm:$0x3]
      %206 = vrot.lane.b32.xlu0 %v202, 126
      %v207 = vpop.permute.xlu0 %206
      %208 = vrot.lane.b32.xlu0 %v203, 126
      %v209 = vpop.permute.xlu0 %208
      %v210 = vrot.slane %v207, 4
      %v211 = vrot.slane %v209, 4
      %v212 = vsel %vm196, %v210, %v211
      %vm213 = vcmask 1031168
      %v214 = vsel %vm213, %v207, %v212
      %216 = vst [vmem:[#allocation2 + $0x18] sm:$0x33] %v214
      %v217 = vld [vmem:[%s170] sm:$0x33]
      %v218 = vld [vmem:[%s170 + $0x8] sm:$0x3]
      %v221 = vrot.slane %v217, 6
      %v222 = vrot.slane %v218, 6
      %223 = vrot.lane.b32.xlu0 %v221, 112
      %v224 = vpop.permute.xlu0 %223
      %225 = vrot.lane.b32.xlu0 %v222, 112
      %v226 = vpop.permute.xlu0 %225
      %v227 = vrot.slane %v224, 4
      %v228 = vrot.slane %v226, 4
      %v229 = vsel %vm196, %v227, %v228
      %vm230 = vcmask 916480
      %v231 = vsel %vm230, %v224, %v229
      %233 = vst [vmem:[#allocation2 + $0x18] sm:$0xcc] %v231
      %v234 = vld [vmem:[%s170] sm:$0x33]
      %v235 = vld [vmem:[%s170 + $0x8] sm:$0x3]
      %238 = vrot.lane.b32.xlu0 %v234, 111
      %v239 = vpop.permute.xlu0 %238
      %240 = vrot.lane.b32.xlu0 %v235, 111
      %v241 = vpop.permute.xlu0 %240
      %v242 = vrot.slane %v239, 4
      %v243 = vrot.slane %v241, 4
      %v244 = vsel %vm196, %v242, %v243
      %vm245 = vcmask 908288
      %v246 = vsel %vm245, %v239, %v244
      %248 = vst [vmem:[#allocation2 + $0x30] sm:$0x33] %v246
      %v249 = vld [vmem:[%s170] sm:$0x33]
      %v250 = vld [vmem:[%s170 + $0x8] sm:$0x3]
      %v253 = vrot.slane %v249, 6
      %v254 = vrot.slane %v250, 6
      %255 = vrot.lane.b32.xlu0 %v253, 110
      %v256 = vpop.permute.xlu0 %255
      %257 = vrot.lane.b32.xlu0 %v254, 110
      %v258 = vpop.permute.xlu0 %257
      %v259 = vrot.slane %v256, 4
      %v260 = vrot.slane %v258, 4
      %v261 = vsel %vm196, %v259, %v260
      %vm262 = vcmask 900096
      %v263 = vsel %vm262, %v256, %v261
      %265 = vst [vmem:[#allocation2 + $0x30] sm:$0xcc] %v263
      %v266 = vld [vmem:[%s170] sm:$0x33]
      %v267 = vld [vmem:[%s170 + $0x8] sm:$0x3]
      %270 = vrot.lane.b32.xlu0 %v266, 96
      %v271 = vpop.permute.xlu0 %270
      %272 = vrot.lane.b32.xlu0 %v267, 96
      %v273 = vpop.permute.xlu0 %272
      %v274 = vrot.slane %v271, 4
      %v275 = vrot.slane %v273, 4
      %v276 = vsel %vm196, %v274, %v275
      %vm277 = vcmask 785408
      %v278 = vsel %vm277, %v271, %v276
      %280 = vst [vmem:[#allocation2 + $0x48] sm:$0x33] %v278
      %v281 = vld [vmem:[%s170] sm:$0x33]
      %v282 = vld [vmem:[%s170 + $0x8] sm:$0x3]
      %v285 = vrot.slane %v281, 6
      %v286 = vrot.slane %v282, 6
      %287 = vrot.lane.b32.xlu0 %v285, 95
      %v288 = vpop.permute.xlu0 %287
      %289 = vrot.lane.b32.xlu0 %v286, 95
      %v290 = vpop.permute.xlu0 %289
      %v291 = vrot.slane %v288, 4
      %v292 = vrot.slane %v290, 4
      %v293 = vsel %vm196, %v291, %v292
      %vm294 = vcmask 777216
      %v295 = vsel %vm294, %v288, %v293
      %297 = vst [vmem:[#allocation2 + $0x48] sm:$0xcc] %v295
      %v298 = vld [vmem:[%s170] sm:$0x33]
      %v299 = vld [vmem:[%s170 + $0x8] sm:$0x3]
      %302 = vrot.lane.b32.xlu0 %v298, 94
      %v303 = vpop.permute.xlu0 %302
      %304 = vrot.lane.b32.xlu0 %v299, 94
      %v305 = vpop.permute.xlu0 %304
      %v306 = vrot.slane %v303, 4
      %v307 = vrot.slane %v305, 4
      %v308 = vsel %vm196, %v306, %v307
      %vm309 = vcmask 769024
      %v310 = vsel %vm309, %v303, %v308
      %312 = vst [vmem:[#allocation2 + $0x60] sm:$0x33] %v310
      %v313 = vld [vmem:[%s170] sm:$0xcc]
      %v315 = vrot.slane %v313, 6
      %v316 = vrot.slane %v315, 4
      %318 = vst [vmem:[#allocation2 + $0x8] sm:$0x33] %v316
      %v319 = vld [vmem:[%s170] sm:$0xcc]
      %v320 = vld [vmem:[%s170 + $0x8] sm:$0xc]
      %323 = vrot.lane.b32.xlu0 %v319, 127
      %v324 = vpop.permute.xlu0 %323
      %325 = vrot.lane.b32.xlu0 %v320, 127
      %v326 = vpop.permute.xlu0 %325
      %v327 = vrot.slane %v324, 4
      %v328 = vrot.slane %v326, 4
      %v329 = vsel %vm196, %v327, %v328
      %v330 = vsel %vm198, %v324, %v329
      %332 = vst [vmem:[#allocation2 + $0x8] sm:$0xcc] %v330
      %v333 = vld [vmem:[%s170] sm:$0xcc]
      %v334 = vld [vmem:[%s170 + $0x8] sm:$0xc]
      %v337 = vrot.slane %v333, 6
      %v338 = vrot.slane %v337, 4
      %v339 = vrot.slane %v334, 6
      %v340 = vrot.slane %v339, 4
      %341 = vrot.lane.b32.xlu0 %v338, 126
      %v342 = vpop.permute.xlu0 %341
      %343 = vrot.lane.b32.xlu0 %v340, 126
      %v344 = vpop.permute.xlu0 %343
      %v345 = vrot.slane %v342, 4
      %v346 = vrot.slane %v344, 4
      %v347 = vsel %vm196, %v345, %v346
      %v348 = vsel %vm213, %v342, %v347
      %350 = vst [vmem:[#allocation2 + $0x20] sm:$0x33] %v348
      %v351 = vld [vmem:[%s170] sm:$0xcc]
      %v352 = vld [vmem:[%s170 + $0x8] sm:$0xc]
      %355 = vrot.lane.b32.xlu0 %v351, 112
      %v356 = vpop.permute.xlu0 %355
      %357 = vrot.lane.b32.xlu0 %v352, 112
      %v358 = vpop.permute.xlu0 %357
      %v359 = vrot.slane %v356, 4
      %v360 = vrot.slane %v358, 4
      %v361 = vsel %vm196, %v359, %v360
      %v362 = vsel %vm230, %v356, %v361
      %364 = vst [vmem:[#allocation2 + $0x20] sm:$0xcc] %v362
      %v365 = vld [vmem:[%s170] sm:$0xcc]
      %v366 = vld [vmem:[%s170 + $0x8] sm:$0xc]
      %v369 = vrot.slane %v365, 6
      %v370 = vrot.slane %v369, 4
      %v371 = vrot.slane %v366, 6
      %v372 = vrot.slane %v371, 4
      %373 = vrot.lane.b32.xlu0 %v370, 111
      %v374 = vpop.permute.xlu0 %373
      %375 = vrot.lane.b32.xlu0 %v372, 111
      %v376 = vpop.permute.xlu0 %375
      %v377 = vrot.slane %v374, 4
      %v378 = vrot.slane %v376, 4
      %v379 = vsel %vm196, %v377, %v378
      %v380 = vsel %vm245, %v374, %v379
      %382 = vst [vmem:[#allocation2 + $0x38] sm:$0x33] %v380
      %v383 = vld [vmem:[%s170] sm:$0xcc]
      %v384 = vld [vmem:[%s170 + $0x8] sm:$0xc]
      %387 = vrot.lane.b32.xlu0 %v383, 110
      %v388 = vpop.permute.xlu0 %387
      %389 = vrot.lane.b32.xlu0 %v384, 110
      %v390 = vpop.permute.xlu0 %389
      %v391 = vrot.slane %v388, 4
      %v392 = vrot.slane %v390, 4
      %v393 = vsel %vm196, %v391, %v392
      %v394 = vsel %vm262, %v388, %v393
      %396 = vst [vmem:[#allocation2 + $0x38] sm:$0xcc] %v394
      %v397 = vld [vmem:[%s170] sm:$0xcc]
      %v398 = vld [vmem:[%s170 + $0x8] sm:$0xc]
      %v401 = vrot.slane %v397, 6
      %v402 = vrot.slane %v401, 4
      %v403 = vrot.slane %v398, 6
      %v404 = vrot.slane %v403, 4
      %405 = vrot.lane.b32.xlu0 %v402, 96
      %v406 = vpop.permute.xlu0 %405
      %407 = vrot.lane.b32.xlu0 %v404, 96
      %v408 = vpop.permute.xlu0 %407
      %v409 = vrot.slane %v406, 4
      %v410 = vrot.slane %v408, 4
      %v411 = vsel %vm196, %v409, %v410
      %v412 = vsel %vm277, %v406, %v411
      %414 = vst [vmem:[#allocation2 + $0x50] sm:$0x33] %v412
      %v415 = vld [vmem:[%s170] sm:$0xcc]
      %v416 = vld [vmem:[%s170 + $0x8] sm:$0xc]
      %419 = vrot.lane.b32.xlu0 %v415, 95
      %v420 = vpop.permute.xlu0 %419
      %421 = vrot.lane.b32.xlu0 %v416, 95
      %v422 = vpop.permute.xlu0 %421
      %v423 = vrot.slane %v420, 4
      %v424 = vrot.slane %v422, 4
      %v425 = vsel %vm196, %v423, %v424
      %v426 = vsel %vm294, %v420, %v425
      %428 = vst [vmem:[#allocation2 + $0x50] sm:$0xcc] %v426
      %v429 = vld [vmem:[%s170] sm:$0xcc]
      %v430 = vld [vmem:[%s170 + $0x8] sm:$0xc]
      %v433 = vrot.slane %v429, 6
      %v434 = vrot.slane %v433, 4
      %v435 = vrot.slane %v430, 6
      %v436 = vrot.slane %v435, 4
      %437 = vrot.lane.b32.xlu0 %v434, 94
      %v438 = vpop.permute.xlu0 %437
      %439 = vrot.lane.b32.xlu0 %v436, 94
      %v440 = vpop.permute.xlu0 %439
      %v441 = vrot.slane %v438, 4
      %v442 = vrot.slane %v440, 4
      %v443 = vsel %vm196, %v441, %v442
      %v444 = vsel %vm309, %v438, %v443
      %446 = vst [vmem:[#allocation2 + $0x68] sm:$0x33] %v444
      %v447 = vld [vmem:[%s170 + $0xc] sm:$0x33]
      %448 = vst [vmem:[#allocation2 + $0x10] sm:$0x33] %v447
      %v449 = vld [vmem:[%s170 + $0xc] sm:$0x33]
      %v450 = vld [vmem:[%s170 + $0x14] sm:$0x3]
      %v453 = vrot.slane %v449, 6
      %v454 = vrot.slane %v450, 6
      %455 = vrot.lane.b32.xlu0 %v453, 127
      %v456 = vpop.permute.xlu0 %455
      %457 = vrot.lane.b32.xlu0 %v454, 127
      %v458 = vpop.permute.xlu0 %457
      %v459 = vrot.slane %v456, 4
      %v460 = vrot.slane %v458, 4
      %v461 = vsel %vm196, %v459, %v460
      %v462 = vsel %vm198, %v456, %v461
      %464 = vst [vmem:[#allocation2 + $0x10] sm:$0xcc] %v462
      %v465 = vld [vmem:[%s170 + $0xc] sm:$0x33]
      %v466 = vld [vmem:[%s170 + $0x14] sm:$0x3]
      %469 = vrot.lane.b32.xlu0 %v465, 126
      %v470 = vpop.permute.xlu0 %469
      %471 = vrot.lane.b32.xlu0 %v466, 126
      %v472 = vpop.permute.xlu0 %471
      %v473 = vrot.slane %v470, 4
      %v474 = vrot.slane %v472, 4
      %v475 = vsel %vm196, %v473, %v474
      %v476 = vsel %vm213, %v470, %v475
      %478 = vst [vmem:[#allocation2 + $0x28] sm:$0x33] %v476
      %v479 = vld [vmem:[%s170 + $0xc] sm:$0x33]
      %v480 = vld [vmem:[%s170 + $0x14] sm:$0x3]
      %v483 = vrot.slane %v479, 6
      %v484 = vrot.slane %v480, 6
      %485 = vrot.lane.b32.xlu0 %v483, 112
      %v486 = vpop.permute.xlu0 %485
      %487 = vrot.lane.b32.xlu0 %v484, 112
      %v488 = vpop.permute.xlu0 %487
      %v489 = vrot.slane %v486, 4
      %v490 = vrot.slane %v488, 4
      %v491 = vsel %vm196, %v489, %v490
      %v492 = vsel %vm230, %v486, %v491
      %494 = vst [vmem:[#allocation2 + $0x28] sm:$0xcc] %v492
      %v495 = vld [vmem:[%s170 + $0xc] sm:$0x33]
      %v496 = vld [vmem:[%s170 + $0x14] sm:$0x3]
      %499 = vrot.lane.b32.xlu0 %v495, 111
      %v500 = vpop.permute.xlu0 %499
      %501 = vrot.lane.b32.xlu0 %v496, 111
      %v502 = vpop.permute.xlu0 %501
      %v503 = vrot.slane %v500, 4
      %v504 = vrot.slane %v502, 4
      %v505 = vsel %vm196, %v503, %v504
      %v506 = vsel %vm245, %v500, %v505
      %508 = vst [vmem:[#allocation2 + $0x40] sm:$0x33] %v506
      %v509 = vld [vmem:[%s170 + $0xc] sm:$0x33]
      %v510 = vld [vmem:[%s170 + $0x14] sm:$0x3]
      %v513 = vrot.slane %v509, 6
      %v514 = vrot.slane %v510, 6
      %515 = vrot.lane.b32.xlu0 %v513, 110
      %v516 = vpop.permute.xlu0 %515
      %517 = vrot.lane.b32.xlu0 %v514, 110
      %v518 = vpop.permute.xlu0 %517
      %v519 = vrot.slane %v516, 4
      %v520 = vrot.slane %v518, 4
      %v521 = vsel %vm196, %v519, %v520
      %v522 = vsel %vm262, %v516, %v521
      %524 = vst [vmem:[#allocation2 + $0x40] sm:$0xcc] %v522
      %v525 = vld [vmem:[%s170 + $0xc] sm:$0x33]
      %v526 = vld [vmem:[%s170 + $0x14] sm:$0x3]
      %529 = vrot.lane.b32.xlu0 %v525, 96
      %v530 = vpop.permute.xlu0 %529
      %531 = vrot.lane.b32.xlu0 %v526, 96
      %v532 = vpop.permute.xlu0 %531
      %v533 = vrot.slane %v530, 4
      %v534 = vrot.slane %v532, 4
      %v535 = vsel %vm196, %v533, %v534
      %v536 = vsel %vm277, %v530, %v535
      %538 = vst [vmem:[#allocation2 + $0x58] sm:$0x33] %v536
      %v539 = vld [vmem:[%s170 + $0xc] sm:$0x33]
      %v540 = vld [vmem:[%s170 + $0x14] sm:$0x3]
      %v543 = vrot.slane %v539, 6
      %v544 = vrot.slane %v540, 6
      %545 = vrot.lane.b32.xlu0 %v543, 95
      %v546 = vpop.permute.xlu0 %545
      %547 = vrot.lane.b32.xlu0 %v544, 95
      %v548 = vpop.permute.xlu0 %547
      %v549 = vrot.slane %v546, 4
      %v550 = vrot.slane %v548, 4
      %v551 = vsel %vm196, %v549, %v550
      %v552 = vsel %vm294, %v546, %v551
      %554 = vst [vmem:[#allocation2 + $0x58] sm:$0xcc] %v552
      %v555 = vld [vmem:[%s170 + $0xc] sm:$0x33]
      %v556 = vld [vmem:[%s170 + $0x14] sm:$0x3]
      %559 = vrot.lane.b32.xlu0 %v555, 94
      %v560 = vpop.permute.xlu0 %559
      %561 = vrot.lane.b32.xlu0 %v556, 94
      %v562 = vpop.permute.xlu0 %561
      %v563 = vrot.slane %v560, 4
      %v564 = vrot.slane %v562, 4
      %v565 = vsel %vm196, %v563, %v564
      %v566 = vsel %vm309, %v560, %v565
      %568 = vst [vmem:[#allocation2 + $0x70] sm:$0x33] %v566
      %v569 = vld [vmem:[%s1] sm:$0xf]
      %v570 = vld [vmem:[#allocation2] sm:$0xff]
      %v571 = vld [vmem:[#allocation2 + $0x8] sm:$0xff]
      %v572 = vld [vmem:[#allocation2 + $0x10] sm:$0xff]
      %v573 = vld [vmem:[#allocation2 + $0x18] sm:$0xff]
      %v574 = vld [vmem:[#allocation2 + $0x20] sm:$0xff]
      %v575 = vld [vmem:[#allocation2 + $0x28] sm:$0xff]
      %v576 = vld [vmem:[#allocation2 + $0x30] sm:$0xff]
      %v577 = vld [vmem:[#allocation2 + $0x38] sm:$0xff]
      %v578 = vld [vmem:[#allocation2 + $0x40] sm:$0xff]
      %v579 = vld [vmem:[#allocation2 + $0x48] sm:$0xff]
      %v580 = vld [vmem:[#allocation2 + $0x50] sm:$0xff]
      %v581 = vld [vmem:[#allocation2 + $0x58] sm:$0xff]
      %v582 = vld [vmem:[#allocation2 + $0x60] sm:$0x33]
      %v583 = vld [vmem:[#allocation2 + $0x68] sm:$0x33]
      %v584 = vld [vmem:[#allocation2 + $0x70] sm:$0x33]
      %v600 = vunpack.c.l.b16 %v570
      %v601 = vunpack.c.h.b16 %v570
      %v602 = vunpack.c.l.b16 %v571
      %v603 = vunpack.c.h.b16 %v571
      %v604 = vunpack.c.l.b16 %v572
      %v605 = vunpack.c.h.b16 %v572
      %v606 = vunpack.c.l.b16 %v573
      %v607 = vunpack.c.h.b16 %v573
      %v608 = vunpack.c.l.b16 %v574
      %v609 = vunpack.c.h.b16 %v574
      %v610 = vunpack.c.l.b16 %v575
      %v611 = vunpack.c.h.b16 %v575
      %v612 = vunpack.c.l.b16 %v576
      %v613 = vunpack.c.h.b16 %v576
      %v614 = vunpack.c.l.b16 %v577
      %v615 = vunpack.c.h.b16 %v577
      %v616 = vunpack.c.l.b16 %v578
      %v617 = vunpack.c.h.b16 %v578
      %v618 = vunpack.c.l.b16 %v579
      %v619 = vunpack.c.h.b16 %v579
      %v620 = vunpack.c.l.b16 %v580
      %v621 = vunpack.c.h.b16 %v580
      %v622 = vunpack.c.l.b16 %v581
      %v623 = vunpack.c.h.b16 %v581
      %v624 = vunpack.c.l.b16 %v582
      %v625 = vunpack.c.h.b16 %v582
      %v626 = vunpack.c.l.b16 %v583
      %v627 = vunpack.c.h.b16 %v583
      %v628 = vunpack.c.l.b16 %v584
      %v629 = vunpack.c.h.b16 %v584
      %v630 = vpack.c.b16 %v606, %v600
      %v631 = vpack.c.b16 %v607, %v601
      %v632 = vpack.c.b16 %v608, %v602
      %v633 = vpack.c.b16 %v609, %v603
      %v634 = vpack.c.b16 %v610, %v604
      %v635 = vpack.c.b16 %v611, %v605
      %v636 = vpack.c.b16 %v618, %v612
      %v637 = vpack.c.b16 %v619, %v613
      %v638 = vpack.c.b16 %v620, %v614
      %v639 = vpack.c.b16 %v621, %v615
      %v640 = vpack.c.b16 %v622, %v616
      %v641 = vpack.c.b16 %v623, %v617
      %v642 = vpack.c.b16 %v624, %v624
      %v643 = vpack.c.b16 %v625, %v625
      %v644 = vpack.c.b16 %v626, %v626
      %v645 = vpack.c.b16 %v627, %v627
      %v646 = vpack.c.b16 %v628, %v628
      %v647 = vpack.c.b16 %v629, %v629
      %vm660 = vcmask 293888
      %v662 = vsel %vm660, %v569, 0
      %vm664 = vcmask 1041408
      %v666 = vsel %vm664, %v642, 0
      %v669 = vsel %vm664, %v643, 0
      %v672 = vsel %vm664, %v644, 0
      %v675 = vsel %vm664, %v645, 0
      %v678 = vsel %vm664, %v646, 0
      %v681 = vsel %vm664, %v647, 0
      %683 = vmatpush.bf16.msra.mxu0 0
      %684 = vmatpush.bf16.msra.mxu0 0
      %685 = vmatpush.bf16.msra.mxu0 0
      %686 = vmatpush.bf16.msra.mxu0 0
      %687 = vmatpush.bf16.msra.mxu0 0
      %688 = vmatpush.bf16.msra.mxu0 %v666
      %689 = vmatpush.bf16.msra.mxu0 %v636
      %690 = vmatpush.bf16.msra.mxu0 %v630
      %691 = vmatmul.bf16.gmra.mxu0 %v662
      %v692 = vpop.f32.mrf.mxu0
      %v693 = vadd.f32 0.0, %v692
      %v694 = vpop.f32.mrf.mxu0
      %695 = vdwg.mxu0
      %696 = vmatpush.bf16.msra.mxu0 0
      %697 = vmatpush.bf16.msra.mxu0 0
      %698 = vmatpush.bf16.msra.mxu0 0
      %699 = vmatpush.bf16.msra.mxu0 0
      %700 = vmatpush.bf16.msra.mxu0 0
      %701 = vmatpush.bf16.msra.mxu0 %v669
      %702 = vmatpush.bf16.msra.mxu0 %v637
      %703 = vmatpush.bf16.msra.mxu0 %v631
      %704 = vmatmul.bf16.gmra.mxu0 %v662
      %v705 = vpop.f32.mrf.mxu0
      %v706 = vadd.f32 0.0, %v705
      %v707 = vpop.f32.mrf.mxu0
      %708 = vdwg.mxu0
      %709 = vmatpush.bf16.msra.mxu0 0
      %710 = vmatpush.bf16.msra.mxu0 0
      %711 = vmatpush.bf16.msra.mxu0 0
      %712 = vmatpush.bf16.msra.mxu0 0
      %713 = vmatpush.bf16.msra.mxu0 0
      %714 = vmatpush.bf16.msra.mxu0 %v672
      %715 = vmatpush.bf16.msra.mxu0 %v638
      %716 = vmatpush.bf16.msra.mxu0 %v632
      %717 = vmatmul.bf16.gmra.mxu0 %v662
      %v718 = vpop.f32.mrf.mxu0
      %v719 = vadd.f32 0.0, %v718
      %v720 = vpop.f32.mrf.mxu0
      %721 = vdwg.mxu0
      %722 = vmatpush.bf16.msra.mxu0 0
      %723 = vmatpush.bf16.msra.mxu0 0
      %724 = vmatpush.bf16.msra.mxu0 0
      %725 = vmatpush.bf16.msra.mxu0 0
      %726 = vmatpush.bf16.msra.mxu0 0
      %727 = vmatpush.bf16.msra.mxu0 %v675
      %728 = vmatpush.bf16.msra.mxu0 %v639
      %729 = vmatpush.bf16.msra.mxu0 %v633
      %730 = vmatmul.bf16.gmra.mxu0 %v662
      %v731 = vpop.f32.mrf.mxu0
      %v732 = vadd.f32 0.0, %v731
      %v733 = vpop.f32.mrf.mxu0
      %734 = vdwg.mxu0
      %735 = vmatpush.bf16.msra.mxu0 0
      %736 = vmatpush.bf16.msra.mxu0 0
      %737 = vmatpush.bf16.msra.mxu0 0
      %738 = vmatpush.bf16.msra.mxu0 0
      %739 = vmatpush.bf16.msra.mxu0 0
      %740 = vmatpush.bf16.msra.mxu0 %v678
      %741 = vmatpush.bf16.msra.mxu0 %v640
      %742 = vmatpush.bf16.msra.mxu0 %v634
      %743 = vmatmul.bf16.gmra.mxu0 %v662
      %v744 = vpop.f32.mrf.mxu0
      %v745 = vadd.f32 0.0, %v744
      %v746 = vpop.f32.mrf.mxu0
      %747 = vdwg.mxu0
      %748 = vmatpush.bf16.msra.mxu0 0
      %749 = vmatpush.bf16.msra.mxu0 0
      %750 = vmatpush.bf16.msra.mxu0 0
      %751 = vmatpush.bf16.msra.mxu0 0
      %752 = vmatpush.bf16.msra.mxu0 0
      %753 = vmatpush.bf16.msra.mxu0 %v681
      %754 = vmatpush.bf16.msra.mxu0 %v641
      %755 = vmatpush.bf16.msra.mxu0 %v635
      %756 = vmatmul.bf16.gmra.mxu0 %v662
      %v757 = vpop.f32.mrf.mxu0
      %v758 = vadd.f32 0.0, %v757
      %v759 = vpop.f32.mrf.mxu0
      %760 = vdwg.mxu0
      %v761 = vmul.f32 %v693, %v693
      %v762 = vmul.f32 %v706, %v706
      %v763 = vmul.f32 %v719, %v719
      %v764 = vmul.f32 %v732, %v732
      %v765 = vadd.f32 %v761, %v763
      %v766 = vadd.f32 %v762, %v764
      %v767 = vmul.f32 %v745, %v745
      %v768 = vmul.f32 %v758, %v758
      %v769 = vadd.f32 %v765, %v767
      %v770 = vadd.f32 %v766, %v768
      %v771 = vmax.f32 %v769, 1e-24
      %v772 = vmax.f32 %v770, 1e-24
      %v773 = vrsqrt.pop %v771
      %v774 = vmul.f32 %v773, %v771
      %v775 = vmul.f32 %v774, %v773
      %v776 = vmul.f32 0.5, %v775
      %v777 = vsub.f32 1.5, %v776
      %v778 = vmul.f32 %v773, %v777
      %vm779 = vweird.f32 %v771
      %vm780 = vweird.f32 %v773
      %vm781 = vmor %vm779, %vm780
      %v782 = vsel %vm781, %v773, %v778
      %v783 = vrsqrt.pop %v772
      %v784 = vmul.f32 %v783, %v772
      %v785 = vmul.f32 %v784, %v783
      %v786 = vmul.f32 0.5, %v785
      %v787 = vsub.f32 1.5, %v786
      %v788 = vmul.f32 %v783, %v787
      %vm789 = vweird.f32 %v772
      %vm790 = vweird.f32 %v783
      %vm791 = vmor %vm789, %vm790
      %v792 = vsel %vm791, %v783, %v788
      %v793 = vmul.f32 %v693, %v782
      %v794 = vmul.f32 %v706, %v792
      %v795 = vpack.c.bf16 %v794, %v793
      %796 = vst [vmem:[%s179] sm:$0xff] %v795
      %v797 = vmul.f32 %v719, %v782
      %v798 = vmul.f32 %v732, %v792
      %v799 = vpack.c.bf16 %v798, %v797
      %s800 = scalar_lea.vmem %s179, 8
      %801 = vst [vmem:[%s800] sm:$0xff] %v799
      %v802 = vmul.f32 %v745, %v782
      %v803 = vmul.f32 %v758, %v792
      %v804 = vpack.c.bf16 %v803, %v802
      %s805 = scalar_lea.vmem %s179, 16
      %806 = vst [vmem:[%s805] sm:$0xff] %v804
      %s807 = smul.u32 2, %s18
      %p808 = scmp.lt.s32.totalorder %s17, 1
      %s809 = scalar_select %p808, %s17, 1
      %p810 = scmp.lt.s32.totalorder %s807, 1
      %s811 = scalar_select %p810, %s807, 1
      %s812 = smul.addr %s809, 6
      %s813 = sadd.s32 %s811, %s812
      %s814 = smul.addr %s813, 4
      %s815 = scalar_lea.vmem %s2, %s814
      // Predicated region
      $region29: #{downsample_block_forward.1} parent=27 // pred_check
        %p816 = pneg %p94
      $region30: #{downsample_block_forward.1} parent=27 // pred_check_branch
        %818 = sbr.rel (%p816) target = $region32
      $region31: #{downsample_block_forward.1} parent=27 // pred_region
        %s819 = smul.u32 2, %s18
      $region32: #{downsample_block_forward.1} parent=27 // pred_fallthru
        _
    $region28: #{downsample_block_forward.1} parent=5 // pred_fallthru
      _
    %p820 = scmp.le.s32.totalorder 2, %s8
    // Predicated region
    $region33: #{downsample_block_forward.1} parent=5 // pred_check
      %p821 = pneg %p820
    $region34: #{downsample_block_forward.1} parent=5 // pred_check_branch
      %823 = sbr.rel (%p821) target = $region36
    $region35: #{downsample_block_forward.1} parent=5 // pred_region
      %s824 = ssub.s32 %s8, 2
      // Predicated region
      $region37: #{downsample_block_forward.1} parent=35 // pred_check
        %p825 = pneg %p100
      $region38: #{downsample_block_forward.1} parent=35 // pred_check_branch
        %827 = sbr.rel (%p825) target = $region40
      $region39: #{downsample_block_forward.1} parent=35 // pred_region
        %s828 = smul.u32 2, %s20
        %p829 = scmp.lt.s32.totalorder %s19, 1
        %s830 = scalar_select %p829, %s19, 1
        %p831 = scmp.lt.s32.totalorder %s828, 1
        %s832 = scalar_select %p831, %s828, 1
        %s833 = smul.addr %s830, 6
        %s834 = sadd.s32 %s832, %s833
        %s835 = smul.addr %s834, 4
        %s836 = scalar_lea.vmem %s2, %s835
      $region40: #{downsample_block_forward.1} parent=35 // pred_fallthru
        _
    $region36: #{downsample_block_forward.1} parent=5 // pred_fallthru
      _
  $region6: #{downsample_block_forward.1} parent=0 // loop_footer
    %s12 = sadd.s32 1, %s8
  $region7: #{downsample_block_forward.1} parent=0 // loop_footer_branch
    %7 = sbr.rel target = $region3
  $region8: #{downsample_block_forward.1} parent=0 // loop_exit
    _

</llo_original>
